<compile_context>
chip_gen: v6e
topology: v6e:2x2x1
jax: 0.10.0
libtpu: 0.0.40
codegen_flags: <defaults>
</compile_context>

<pallas_src>
import functools

import jax
import jax.numpy as jnp
from jax.experimental import pallas as pl
from jax.experimental.pallas import tpu as pltpu


# ----------------------------------------------------------------------------
# helpers
# ----------------------------------------------------------------------------
def _round_up(x, m):
    return (x + m - 1) // m * m


def padded_hidden(H):
    """Pad H so 4*Hp is a multiple of 128 lanes, with >=1 spare pad lane."""
    Hp = _round_up(H, 32)
    if Hp == H:
        Hp += 32
    return Hp


def _choose_tile(B, block_b=None):
    """Pick the batch tile TB and padded batch Bp (TB | Bp, TB % 8 == 0)."""
    Bp8 = _round_up(B, 8)
    if block_b is not None:
        TB = max(8, _round_up(min(block_b, Bp8), 8))
    elif Bp8 <= 16:
        TB = Bp8
    else:
        # >=2 tiles so both v7x TensorCores get work on the "parallel" axis;
        # tiles stay large (v5e/v6e: amortize ~0.35us/step grid overhead) and
        # are capped at 8192 rows so double-buffered (TB,128) f32 in+out slabs
        # (~16 MB) fit comfortably under the 32 MiB scoped VMEM limit and
        # v7x's 64 MiB physical VMEM.
        TB = min(8192, _round_up(pl.cdiv(Bp8, 2), 8))
    Bp = _round_up(Bp8, TB)
    return TB, Bp


def _pad_gate_cols(w, h, hp):
    """(..., 4*h) with PyTorch gate order (i,f,g,o) -> (..., 4*hp), per-gate zero pad."""
    lead = w.shape[:-1]
    w4 = w.reshape(lead + (4, h))
    pad = [(0, 0)] * len(lead) + [(0, 0), (0, hp - h)]
    return jnp.pad(w4, pad).reshape(lead + (4 * hp,))


def prepare_params(params, H, Hp):
    """Per-gate zero padding + fusion of cell-1 weights. Call ONCE, reuse."""
    wih0 = _pad_gate_cols(params["w_ih0"], H, Hp)                     # (1, F)
    whh0 = jnp.pad(_pad_gate_cols(params["w_hh0"], H, Hp),
                   ((0, Hp - H), (0, 0)))                             # (Hp, F)
    b0 = _pad_gate_cols(params["b0"], H, Hp)                          # (1, F)
    wih1 = jnp.pad(_pad_gate_cols(params["w_ih1"], H, Hp),
                   ((0, Hp - H), (0, 0)))                             # (Hp, F)
    whh1 = jnp.pad(_pad_gate_cols(params["w_hh1"], H, Hp),
                   ((0, Hp - H), (0, 0)))                             # (Hp, F)
    w1 = jnp.concatenate([wih1, whh1], axis=0)                        # (2Hp, F)
    b1 = _pad_gate_cols(params["b1"], H, Hp)                          # (1, F)
    wout = jnp.pad(params["w_out"].T, ((0, 0), (0, Hp - H)))          # (1, Hp)
    bout = params["b_out"]                                            # (1, 1)
    emb = jnp.pad(params["emb"].reshape(2, 2, H),
                  ((0, 0), (0, 0), (0, Hp - H))).reshape(2, 2 * Hp)   # (2, 2Hp)
    return (wih0, whh0, b0, w1, b1, wout, bout, emb)


def pack_state(hidden, cell, Bp, Hp):
    """Pack (h0,h1,c0,c1) into one lane-dense (Bp, 4*Hp) slab. Call ONCE."""
    B, H = hidden[0].shape

    def pad(x):
        return jnp.pad(x, ((0, Bp - B), (0, Hp - H)))

    # Invariant (load-bearing): pad lanes enter as 0.  Together with zero pad
    # rows in whh0 / w1, this guarantees stale pad-lane content (incl. the
    # scalar output parked in lane H of the h0 field) never feeds the gates.
    return jnp.concatenate([pad(hidden[0]), pad(hidden[1]),
                            pad(cell[0]), pad(cell[1])], axis=1)


def unpack_slab(slab, B, H):
    Hp = slab.shape[1] // 4
    out = slab[:B, H:H + 1]
    h0n = slab[:B, 0:H]
    h1n = slab[:B, Hp:Hp + H]
    c0n = slab[:B, 2 * Hp:2 * Hp + H]
    c1n = slab[:B, 3 * Hp:3 * Hp + H]
    return out, (h0n, h1n), (c0n, c1n)


# ----------------------------------------------------------------------------
# kernel
# ----------------------------------------------------------------------------
def _opt_mod_kernel(scal_ref, state_ref, wih0_ref, whh0_ref, b0_ref,
                    w1_ref, b1_ref, wout_ref, bout_ref, emb_ref,
                    out_ref, *, hp, h_valid):
    Hp = hp
    F = 4 * Hp
    inp = scal_ref[:, 0:1]              # (TB, 1) gradient value
    sel = scal_ref[:, 1:2]              # (TB, 1) embedding id as float {0., 1.}

    h0 = state_ref[:, 0 * Hp:1 * Hp]
    h1 = state_ref[:, 1 * Hp:2 * Hp]
    c0 = state_ref[:, 2 * Hp:3 * Hp]
    c1 = state_ref[:, 3 * Hp:4 * Hp]

    # Lane-dense gate activations: ONE full-width EUP tanh pass per cell.
    #   sigmoid(x) = 0.5 * tanh(0.5 * x) + 0.5   (single EUP op)
    # i/f/o lanes use the pre-scale / post mul-add form; g lanes come out as
    # plain tanh.  Pad lanes: tanh(0) -> 0.5 (i/f/o) / 0.0 (g), same as before.
    gate_lane = jax.lax.broadcasted_iota(jnp.int32, (1, F), 1)
    is_g = jnp.logical_and(gate_lane >= 2 * Hp, gate_lane < 3 * Hp)
    pre = jnp.where(is_g, 1.0, 0.5).astype(jnp.float32)
    post_a = jnp.where(is_g, 0.0, 0.5).astype(jnp.float32)

    def gate_acts(gates):
        t = jnp.tanh(gates * pre)          # one (TB, 128) EUP pass
        a = t * pre + post_a               # VPU post-scale/shift
        return (a[:, 0 * Hp:1 * Hp], a[:, 1 * Hp:2 * Hp],
                a[:, 2 * Hp:3 * Hp], a[:, 3 * Hp:4 * Hp])

    # ---- LSTM cell 0 (input size 1). The rank-1 input contribution is a VPU
    # broadcast multiply; only the recurrent term touches the MXU.
    gates0 = (inp * wih0_ref[...]
              + jnp.dot(h0, whh0_ref[...], preferred_element_type=jnp.float32)
              + b0_ref[...])
    i0, f0, g0, o0 = gate_acts(gates0)
    c0n = f0 * c0 + i0 * g0
    h0n = o0 * jnp.tanh(c0n)

    # ---- LSTM cell 1: fused [h0n ; h1] @ [W_ih1 ; W_hh1] (one K=2*Hp matmul).
    x1 = jnp.concatenate([h0n, h1], axis=-1)                     # (TB, 2*Hp)
    gates1 = (jnp.dot(x1, w1_ref[...], preferred_element_type=jnp.float32)
              + b1_ref[...])
    i1, f1, g1, o1 = gate_acts(gates1)
    c1n = f1 * c1 + i1 * g1
    h1n = o1 * jnp.tanh(c1n)

    # ---- FiLM modulation: 2-row embedding lookup as a VPU blend (no MXU).
    emb0 = emb_ref[0:1, :]
    emb1 = emb_ref[1:2, :]
    emb_sel = emb0 + sel * (emb1 - emb0)                         # (TB, 2*Hp)
    gammas = emb_sel[:, :Hp] + 1.0
    betas = emb_sel[:, Hp:]
    h1m = h1n * gammas + betas                                   # modulated hidden1

    # ---- Output Linear(H, 1): VPU multiply + lane reduction (no N=1 MXU pop).
    out = jnp.sum(h1m * wout_ref[...], axis=-1, keepdims=True) + bout_ref[...]

    # ---- Pack everything into one lane-dense (TB, 4*Hp) slab. The scalar
    # output is folded into pad lane `h_valid` of the h0 field (that lane of
    # h0n is provably zero).
    lane = jax.lax.broadcasted_iota(jnp.int32, h0n.shape, 1)
    h0_pack = jnp.where(lane == h_valid, out, h0n)
    out_ref[...] = jnp.concatenate([h0_pack, h1m, c0n, c1n], axis=-1)


# ----------------------------------------------------------------------------
# slab-level step (hot path; state stays resident in packed form)
# ----------------------------------------------------------------------------
def opt_mod_step(scal, state_slab, prepped, H, TB):
    """One optimizer step in slab format: (Bp,2), (Bp,4*Hp) -> (Bp,4*Hp)."""
    Bp, F = state_slab.shape
    Hp = F // 4
    assert Bp % TB == 0 and TB % 8 == 0
    grid = (Bp // TB,)
    wih0, whh0, b0, w1, b1, wout, bout, emb = prepped

    batch_spec = lambda feat: pl.BlockSpec((TB, feat), lambda i: (i, 0))
    const_spec = lambda shape: pl.BlockSpec(shape, lambda i: (0,) * len(shape))

    weight_bytes = 4 * sum(int(a.size) for a in prepped)
    cost = pl.CostEstimate(
        flops=int(2 * Bp * (Hp * F + 2 * Hp * F) + Bp * 40 * Hp),
        transcendentals=int(Bp * (2 * F + 2 * Hp)),
        bytes_accessed=int(4 * (scal.size + 2 * state_slab.size) + weight_bytes),
    )

    kernel = functools.partial(_opt_mod_kernel, hp=Hp, h_valid=H)
    return pl.pallas_call(
        kernel,
        out_shape=jax.ShapeDtypeStruct((Bp, F), jnp.float32),
        grid=grid,
        in_specs=[
            batch_spec(2),             # scal  = [inp | id]
            batch_spec(F),             # packed state = [h0 | h1 | c0 | c1]
            const_spec((1, F)),        # w_ih0 row
            const_spec((Hp, F)),       # w_hh0
            const_spec((1, F)),        # b0
            const_spec((2 * Hp, F)),   # [w_ih1 ; w_hh1]
            const_spec((1, F)),        # b1
            const_spec((1, Hp)),       # w_out row
            const_spec((1, 1)),        # b_out
            const_spec((2, 2 * Hp)),   # embedding table
        ],
        out_specs=batch_spec(F),
        input_output_aliases={1: 0},   # reuse the state-slab HBM buffer
        compiler_params=pltpu.CompilerParams(
            dimension_semantics=("parallel",),
            vmem_limit_bytes=32 * 1024 * 1024,
        ),
        cost_estimate=cost,
    )(scal, state_slab, wih0, whh0, b0, w1, b1, wout, bout, emb)


# ----------------------------------------------------------------------------
# convenience wrapper (single forward; packs/unpacks once)
# ----------------------------------------------------------------------------
def optimizer_with_modulation(inp, ids, hidden, cell, params, *, block_b=None):
    """Forward of OptimizerWithModulation (preproc=False path).

    inp: (B,1) f32, ids: (B,) int32, hidden/cell: tuples of two (B,H) f32.
    Returns (out (B,1), (hidden0, hidden1_modulated), (cell0, cell1)).
    For a multi-step optimizer loop, call prepare_params / pack_state once and
    iterate opt_mod_step on the resident slab instead.
    """
    B, H = hidden[0].shape
    Hp = padded_hidden(H)
    TB, Bp = _choose_tile(B, block_b)

    prepped = prepare_params(params, H, Hp)
    scal = jnp.concatenate([inp, ids.astype(jnp.float32)[:, None]], axis=1)
    scal = jnp.pad(scal, ((0, Bp - B), (0, 0)))                       # (Bp, 2)
    slab = pack_state(hidden, cell, Bp, Hp)                           # (Bp, 4Hp)

    slab = opt_mod_step(scal, slab, prepped, H, TB)
    return unpack_slab(slab, B, H)


# ----------------------------------------------------------------------------
# params / pure-JAX reference
# ----------------------------------------------------------------------------
def make_params(key, hidden_sz=20):
    """Init mimicking PyTorch defaults; weights pre-transposed to (in, 4H)."""
    H = hidden_sz
    bound = 1.0 / jnp.sqrt(jnp.float32(H))
    ks = jax.random.split(key, 12)

    def u(k, shape):
        return jax.random.uniform(k, shape, jnp.float32, -bound, bound)

    w_ih0 = u(ks[0], (1, 4 * H))
    w_hh0 = u(ks[1], (H, 4 * H))
    b0 = u(ks[2], (1, 4 * H)) + u(ks[3], (1, 4 * H))
    w_ih1 = u(ks[4], (H, 4 * H))
    w_hh1 = u(ks[5], (H, 4 * H))
    b1 = u(ks[6], (1, 4 * H)) + u(ks[7], (1, 4 * H))
    w_out = u(ks[8], (H, 1))
    b_out = u(ks[9], (1, 1))
    emb = jax.random.normal(ks[10], (2, 2 * H), jnp.float32)
    return dict(w_ih0=w_ih0, w_hh0=w_hh0, b0=b0,
                w_ih1=w_ih1, w_hh1=w_hh1, b1=b1,
                w_out=w_out, b_out=b_out, emb=emb)


def _lstm_cell_ref(x, h, c, w_ih, w_hh, b, H):
    gates = (jnp.dot(x, w_ih, preferred_element_type=jnp.float32)
             + jnp.dot(h, w_hh, preferred_element_type=jnp.float32) + b)
    i = jax.nn.sigmoid(gates[:, 0 * H:1 * H])
    f = jax.nn.sigmoid(gates[:, 1 * H:2 * H])
    g = jnp.tanh(gates[:, 2 * H:3 * H])
    o = jax.nn.sigmoid(gates[:, 3 * H:4 * H])
    c_new = f * c + i * g
    return o * jnp.tanh(c_new), c_new


def _reference(inp, ids, hidden, cell, params):
    H = hidden[0].shape[1]
    h0n, c0n = _lstm_cell_ref(inp, hidden[0], cell[0],
                              params["w_ih0"], params["w_hh0"], params["b0"], H)
    h1n, c1n = _lstm_cell_ref(h0n, hidden[1], cell[1],
                              params["w_ih1"], params["w_hh1"], params["b1"], H)
    emb = params["emb"][ids]
    gammas, betas = emb[:, :H] + 1.0, emb[:, H:]
    h1m = h1n * gammas + betas
    out = h1m @ params["w_out"] + params["b_out"]
    return out, (h0n, h1m), (c0n, c1n)


# ----------------------------------------------------------------------------
# demo / correctness checks
# ----------------------------------------------------------------------------
def _assert_close(pairs):
    for a, b in pairs:
        assert a.shape == b.shape, f"shape mismatch {a.shape} vs {b.shape}"
        assert jnp.allclose(a, b, atol=1e-4, rtol=1e-4), "mismatch vs reference"


def _run_case(key, B, H, block_b):
    ks = jax.random.split(key, 7)
    inp = jax.random.normal(ks[0], (B, 1), jnp.float32)
    ids = jax.random.randint(ks[1], (B,), 0, 2, jnp.int32)
    hidden = (jax.random.normal(ks[2], (B, H), jnp.float32),
              jax.random.normal(ks[3], (B, H), jnp.float32))
    cell = (jax.random.normal(ks[4], (B, H), jnp.float32),
            jax.random.normal(ks[5], (B, H), jnp.float32))
    params = make_params(ks[6], H)

    out, (h0n, h1n), (c0n, c1n) = optimizer_with_modulation(
        inp, ids, hidden, cell, params, block_b=block_b)
    jax.block_until_ready(out)

    r_out, (rh0, rh1), (rc0, rc1) = _reference(inp, ids, hidden, cell, params)
    _assert_close([(out, r_out), (h0n, rh0), (h1n, rh1), (c0n, rc0), (c1n, rc1)])


def _run_resident_case(key, B, H, steps):
    """Multi-step loop on the resident packed slab (the hot-path usage)."""
    ks = jax.random.split(key, 4)
    hidden = (jax.random.normal(ks[0], (B, H), jnp.float32),
              jax.random.normal(ks[1], (B, H), jnp.float32))
    cell = (jax.random.normal(ks[2], (B, H), jnp.float32),
            jnp.zeros((B, H), jnp.float32))
    params = make_params(ks[3], H)

    Hp = padded_hidden(H)
    TB, Bp = _choose_tile(B)
    prepped = prepare_params(params, H, Hp)       # hoisted out of the loop
    slab = pack_state(hidden, cell, Bp, Hp)       # hoisted out of the loop

    ref_hidden, ref_cell = hidden, cell
    for s in range(steps):
        sk = jax.random.fold_in(key, s)
        k_inp, k_id = jax.random.split(sk)
        inp = jax.random.normal(k_inp, (B, 1), jnp.float32)
        ids = jax.random.randint(k_id, (B,), 0, 2, jnp.int32)

        scal = jnp.concatenate([inp, ids.astype(jnp.float32)[:, None]], axis=1)
        scal = jnp.pad(scal, ((0, Bp - B), (0, 0)))
        slab = opt_mod_step(scal, slab, prepped, H, TB)

        out, (h0n, h1m), (c0n, c1n) = unpack_slab(slab, B, H)
        r_out, (rh0, rh1m), (rc0, rc1) = _reference(
            inp, ids, ref_hidden, ref_cell, params)
        ref_hidden, ref_cell = (rh0, rh1m), (rc0, rc1)
        _assert_close([(out, r_out), (h0n, rh0), (h1m, rh1m),
                       (c0n, rc0), (c1n, rc1)])
    jax.block_until_ready(slab)


if __name__ == "__main__":
    key = jax.random.PRNGKey(0)
    k1, k2, k3 = jax.random.split(key, 3)
    _run_case(k1, B=8, H=20, block_b=None)        # single-tile path
    _run_case(k2, B=300, H=20, block_b=128)       # padding + 3-step grid path
    _run_resident_case(k3, B=64, H=20, steps=3)   # resident slab, 2-tile grid
    print("KERNEL_OK")
</pallas_src>

<mosaic_0001>
module attributes {stable_mosaic.version = 11 : i64} {
  func.func @_opt_mod_kernel(%arg0: i32, %arg1: memref<8x2xf32, #tpu.memory_space<vmem>>, %arg2: memref<8x128xf32, #tpu.memory_space<vmem>>, %arg3: memref<1x128xf32, #tpu.memory_space<vmem>>, %arg4: memref<32x128xf32, #tpu.memory_space<vmem>>, %arg5: memref<1x128xf32, #tpu.memory_space<vmem>>, %arg6: memref<64x128xf32, #tpu.memory_space<vmem>>, %arg7: memref<1x128xf32, #tpu.memory_space<vmem>>, %arg8: memref<1x32xf32, #tpu.memory_space<vmem>>, %arg9: memref<1x1xf32, #tpu.memory_space<vmem>>, %arg10: memref<2x64xf32, #tpu.memory_space<vmem>>, %arg11: memref<8x128xf32, #tpu.memory_space<vmem>>) attributes {dimension_semantics = [#tpu.dimension_semantics<parallel>], iteration_bounds = array<i64: 1>, scalar_prefetch = 0 : i64, scratch_operands = 0 : i64, tpu.core_type = #tpu.core_type<tc>, window_params = [{transform_indices = @transform_0, window_bounds = array<i64: 8, 2>}, {transform_indices = @transform_1, window_bounds = array<i64: 8, 128>}, {pipeline_mode = #tpu.pipeline_mode<synchronous>, transform_indices = @transform_2, window_bounds = array<i64: 1, 128>}, {pipeline_mode = #tpu.pipeline_mode<synchronous>, transform_indices = @transform_3, window_bounds = array<i64: 32, 128>}, {pipeline_mode = #tpu.pipeline_mode<synchronous>, transform_indices = @transform_4, window_bounds = array<i64: 1, 128>}, {pipeline_mode = #tpu.pipeline_mode<synchronous>, transform_indices = @transform_5, window_bounds = array<i64: 64, 128>}, {pipeline_mode = #tpu.pipeline_mode<synchronous>, transform_indices = @transform_6, window_bounds = array<i64: 1, 128>}, {pipeline_mode = #tpu.pipeline_mode<synchronous>, transform_indices = @transform_7, window_bounds = array<i64: 1, 32>}, {pipeline_mode = #tpu.pipeline_mode<synchronous>, transform_indices = @transform_8, window_bounds = array<i64: 1, 1>}, {pipeline_mode = #tpu.pipeline_mode<synchronous>, transform_indices = @transform_9, window_bounds = array<i64: 2, 64>}, {transform_indices = @transform_10, window_bounds = array<i64: 8, 128>}]} {
    %c0 = arith.constant 0 : index
    %c0_0 = arith.constant 0 : index
    %0 = vector.load %arg1[%c0, %c0_0] : memref<8x2xf32, #tpu.memory_space<vmem>>, vector<8x1xf32>
    %c0_1 = arith.constant 0 : index
    %c1 = arith.constant 1 : index
    %1 = vector.load %arg1[%c0_1, %c1] : memref<8x2xf32, #tpu.memory_space<vmem>>, vector<8x1xf32>
    %c0_2 = arith.constant 0 : index
    %c0_3 = arith.constant 0 : index
    %2 = vector.load %arg2[%c0_2, %c0_3] : memref<8x128xf32, #tpu.memory_space<vmem>>, vector<8x32xf32>
    %c0_4 = arith.constant 0 : index
    %c32 = arith.constant 32 : index
    %3 = vector.load %arg2[%c0_4, %c32] : memref<8x128xf32, #tpu.memory_space<vmem>>, vector<8x32xf32>
    %c0_5 = arith.constant 0 : index
    %c64 = arith.constant 64 : index
    %4 = vector.load %arg2[%c0_5, %c64] : memref<8x128xf32, #tpu.memory_space<vmem>>, vector<8x32xf32>
    %c0_6 = arith.constant 0 : index
    %c96 = arith.constant 96 : index
    %5 = vector.load %arg2[%c0_6, %c96] : memref<8x128xf32, #tpu.memory_space<vmem>>, vector<8x32xf32>
    %6 = tpu.iota {dimensions = array<i32: 1>} : vector<1x128xi32>
    %c64_i32 = arith.constant 64 : i32
    %7 = vector.broadcast %c64_i32 : i32 to vector<1x128xi32>
    %8 = arith.cmpi sge, %6, %7 : vector<1x128xi32>
    %c96_i32 = arith.constant 96 : i32
    %9 = vector.broadcast %c96_i32 : i32 to vector<1x128xi32>
    %10 = arith.cmpi slt, %6, %9 : vector<1x128xi32>
    %11 = arith.andi %8, %10 : vector<1x128xi1>
    %cst = arith.constant 1.000000e+00 : f32
    %cst_7 = arith.constant 5.000000e-01 : f32
    %12 = vector.broadcast %cst : f32 to vector<1x128xf32>
    %13 = vector.broadcast %cst_7 : f32 to vector<1x128xf32>
    %14 = arith.select %11, %12, %13 : vector<1x128xi1>, vector<1x128xf32>
    %cst_8 = arith.constant 0.000000e+00 : f32
    %cst_9 = arith.constant 5.000000e-01 : f32
    %15 = vector.broadcast %cst_8 : f32 to vector<1x128xf32>
    %16 = vector.broadcast %cst_9 : f32 to vector<1x128xf32>
    %17 = arith.select %11, %15, %16 : vector<1x128xi1>, vector<1x128xf32>
    %c0_10 = arith.constant 0 : index
    %c0_11 = arith.constant 0 : index
    %18 = vector.load %arg3[%c0_10, %c0_11] : memref<1x128xf32, #tpu.memory_space<vmem>>, vector<1x128xf32>
    %19 = vector.broadcast %0 : vector<8x1xf32> to vector<8x128xf32>
    %20 = vector.broadcast %18 : vector<1x128xf32> to vector<8x128xf32>
    %21 = arith.mulf %19, %20 : vector<8x128xf32>
    %c0_12 = arith.constant 0 : index
    %c0_13 = arith.constant 0 : index
    %22 = vector.load %arg4[%c0_12, %c0_13] : memref<32x128xf32, #tpu.memory_space<vmem>>, vector<32x128xf32>
    %cst_14 = arith.constant dense<0.000000e+00> : vector<8x128xf32>
    %23 = tpu.matmul %2, %22, %cst_14 {dimension_numbers = #tpu.dot_dimension_numbers<[1], [0], [0], [1], [0, 0, 1, 1], [], []>} : vector<8x32xf32>, vector<32x128xf32>, vector<8x128xf32> -> vector<8x128xf32>
    %24 = arith.addf %21, %23 : vector<8x128xf32>
    %c0_15 = arith.constant 0 : index
    %c0_16 = arith.constant 0 : index
    %25 = vector.load %arg5[%c0_15, %c0_16] : memref<1x128xf32, #tpu.memory_space<vmem>>, vector<1x128xf32>
    %26 = vector.broadcast %25 : vector<1x128xf32> to vector<8x128xf32>
    %27 = arith.addf %24, %26 : vector<8x128xf32>
    %28 = vector.broadcast %14 : vector<1x128xf32> to vector<8x128xf32>
    %29 = arith.mulf %27, %28 : vector<8x128xf32>
    %30 = math.tanh %29 : vector<8x128xf32>
    %31 = vector.broadcast %14 : vector<1x128xf32> to vector<8x128xf32>
    %32 = arith.mulf %30, %31 : vector<8x128xf32>
    %33 = vector.broadcast %17 : vector<1x128xf32> to vector<8x128xf32>
    %34 = arith.addf %32, %33 : vector<8x128xf32>
    %35 = vector.extract_strided_slice %34 {offsets = [0, 0], sizes = [8, 32], strides = [1, 1]} : vector<8x128xf32> to vector<8x32xf32>
    %36 = vector.extract_strided_slice %34 {offsets = [0, 32], sizes = [8, 32], strides = [1, 1]} : vector<8x128xf32> to vector<8x32xf32>
    %37 = vector.extract_strided_slice %34 {offsets = [0, 64], sizes = [8, 32], strides = [1, 1]} : vector<8x128xf32> to vector<8x32xf32>
    %38 = vector.extract_strided_slice %34 {offsets = [0, 96], sizes = [8, 32], strides = [1, 1]} : vector<8x128xf32> to vector<8x32xf32>
    %39 = arith.mulf %36, %4 : vector<8x32xf32>
    %40 = arith.mulf %35, %37 : vector<8x32xf32>
    %41 = arith.addf %39, %40 : vector<8x32xf32>
    %42 = math.tanh %41 : vector<8x32xf32>
    %43 = arith.mulf %38, %42 : vector<8x32xf32>
    %44 = tpu.concatenate %43, %3 in 1 : vector<8x32xf32>, vector<8x32xf32> -> vector<8x64xf32>
    %c0_17 = arith.constant 0 : index
    %c0_18 = arith.constant 0 : index
    %45 = vector.load %arg6[%c0_17, %c0_18] : memref<64x128xf32, #tpu.memory_space<vmem>>, vector<64x128xf32>
    %cst_19 = arith.constant dense<0.000000e+00> : vector<8x128xf32>
    %46 = tpu.matmul %44, %45, %cst_19 {dimension_numbers = #tpu.dot_dimension_numbers<[1], [0], [0], [1], [0, 0, 1, 1], [], []>} : vector<8x64xf32>, vector<64x128xf32>, vector<8x128xf32> -> vector<8x128xf32>
    %c0_20 = arith.constant 0 : index
    %c0_21 = arith.constant 0 : index
    %47 = vector.load %arg7[%c0_20, %c0_21] : memref<1x128xf32, #tpu.memory_space<vmem>>, vector<1x128xf32>
    %48 = vector.broadcast %47 : vector<1x128xf32> to vector<8x128xf32>
    %49 = arith.addf %46, %48 : vector<8x128xf32>
    %50 = vector.broadcast %14 : vector<1x128xf32> to vector<8x128xf32>
    %51 = arith.mulf %49, %50 : vector<8x128xf32>
    %52 = math.tanh %51 : vector<8x128xf32>
    %53 = vector.broadcast %14 : vector<1x128xf32> to vector<8x128xf32>
    %54 = arith.mulf %52, %53 : vector<8x128xf32>
    %55 = vector.broadcast %17 : vector<1x128xf32> to vector<8x128xf32>
    %56 = arith.addf %54, %55 : vector<8x128xf32>
    %57 = vector.extract_strided_slice %56 {offsets = [0, 0], sizes = [8, 32], strides = [1, 1]} : vector<8x128xf32> to vector<8x32xf32>
    %58 = vector.extract_strided_slice %56 {offsets = [0, 32], sizes = [8, 32], strides = [1, 1]} : vector<8x128xf32> to vector<8x32xf32>
    %59 = vector.extract_strided_slice %56 {offsets = [0, 64], sizes = [8, 32], strides = [1, 1]} : vector<8x128xf32> to vector<8x32xf32>
    %60 = vector.extract_strided_slice %56 {offsets = [0, 96], sizes = [8, 32], strides = [1, 1]} : vector<8x128xf32> to vector<8x32xf32>
    %61 = arith.mulf %58, %5 : vector<8x32xf32>
    %62 = arith.mulf %57, %59 : vector<8x32xf32>
    %63 = arith.addf %61, %62 : vector<8x32xf32>
    %64 = math.tanh %63 : vector<8x32xf32>
    %65 = arith.mulf %60, %64 : vector<8x32xf32>
    %c0_22 = arith.constant 0 : index
    %c0_23 = arith.constant 0 : index
    %66 = vector.load %arg10[%c0_22, %c0_23] : memref<2x64xf32, #tpu.memory_space<vmem>>, vector<1x64xf32>
    %c1_24 = arith.constant 1 : index
    %c0_25 = arith.constant 0 : index
    %67 = vector.load %arg10[%c1_24, %c0_25] : memref<2x64xf32, #tpu.memory_space<vmem>>, vector<1x64xf32>
    %68 = arith.subf %67, %66 : vector<1x64xf32>
    %69 = vector.broadcast %1 : vector<8x1xf32> to vector<8x64xf32>
    %70 = vector.broadcast %68 : vector<1x64xf32> to vector<8x64xf32>
    %71 = arith.mulf %69, %70 : vector<8x64xf32>
    %72 = vector.broadcast %66 : vector<1x64xf32> to vector<8x64xf32>
    %73 = arith.addf %72, %71 : vector<8x64xf32>
    %74 = vector.extract_strided_slice %73 {offsets = [0, 0], sizes = [8, 32], strides = [1, 1]} : vector<8x64xf32> to vector<8x32xf32>
    %cst_26 = arith.constant 1.000000e+00 : f32
    %75 = vector.broadcast %cst_26 : f32 to vector<8x32xf32>
    %76 = arith.addf %74, %75 : vector<8x32xf32>
    %77 = vector.extract_strided_slice %73 {offsets = [0, 32], sizes = [8, 32], strides = [1, 1]} : vector<8x64xf32> to vector<8x32xf32>
    %78 = arith.mulf %65, %76 : vector<8x32xf32>
    %79 = arith.addf %78, %77 : vector<8x32xf32>
    %c0_27 = arith.constant 0 : index
    %c0_28 = arith.constant 0 : index
    %80 = vector.load %arg8[%c0_27, %c0_28] : memref<1x32xf32, #tpu.memory_space<vmem>>, vector<1x32xf32>
    %81 = vector.broadcast %80 : vector<1x32xf32> to vector<8x32xf32>
    %82 = arith.mulf %79, %81 : vector<8x32xf32>
    %cst_29 = arith.constant dense<0.000000e+00> : vector<8xf32>
    %83 = vector.multi_reduction <add>, %82, %cst_29 [1] : vector<8x32xf32> to vector<8xf32>
    %84 = vector.shape_cast %83 : vector<8xf32> to vector<8x1xf32>
    %c0_30 = arith.constant 0 : index
    %c0_31 = arith.constant 0 : index
    %85 = vector.load %arg9[%c0_30, %c0_31] : memref<1x1xf32, #tpu.memory_space<vmem>>, vector<1x1xf32>
    %86 = vector.broadcast %85 : vector<1x1xf32> to vector<8x1xf32>
    %87 = arith.addf %84, %86 : vector<8x1xf32>
    %88 = tpu.iota {dimensions = array<i32: 1>} : vector<8x32xi32>
    %c20_i32 = arith.constant 20 : i32
    %89 = vector.broadcast %c20_i32 : i32 to vector<8x32xi32>
    %90 = arith.cmpi eq, %88, %89 : vector<8x32xi32>
    %91 = vector.shape_cast %87 : vector<8x1xf32> to vector<8x1xf32>
    %92 = vector.broadcast %91 : vector<8x1xf32> to vector<8x32xf32>
    %93 = arith.select %90, %92, %43 : vector<8x32xi1>, vector<8x32xf32>
    %94 = tpu.concatenate %93, %79, %41, %63 in 1 : vector<8x32xf32>, vector<8x32xf32>, vector<8x32xf32>, vector<8x32xf32> -> vector<8x128xf32>
    %c0_32 = arith.constant 0 : index
    %c0_33 = arith.constant 0 : index
    %95 = vector.load %arg11[%c0_32, %c0_33] : memref<8x128xf32, #tpu.memory_space<vmem>>, vector<8x128xf32>
    tpu.vector_store %arg11[%c0_32, %c0_33], %94 {strides = array<i32>} : memref<8x128xf32, #tpu.memory_space<vmem>>, vector<8x128xf32>,
    return
  }
  func.func @transform_0(%arg0: i32) -> (i32, i32) {
    %c0_i32 = arith.constant 0 : i32
    %c0_i32_0 = arith.constant 0 : i32
    return %arg0, %c0_i32 : i32, i32
  }
  func.func @transform_1(%arg0: i32) -> (i32, i32) {
    %c0_i32 = arith.constant 0 : i32
    %c0_i32_0 = arith.constant 0 : i32
    return %arg0, %c0_i32 : i32, i32
  }
  func.func @transform_2(%arg0: i32) -> (i32, i32) {
    %c0_i32 = arith.constant 0 : i32
    %c0_i32_0 = arith.constant 0 : i32
    %c0_i32_1 = arith.constant 0 : i32
    return %c0_i32, %c0_i32_0 : i32, i32
  }
  func.func @transform_3(%arg0: i32) -> (i32, i32) {
    %c0_i32 = arith.constant 0 : i32
    %c0_i32_0 = arith.constant 0 : i32
    %c0_i32_1 = arith.constant 0 : i32
    return %c0_i32, %c0_i32_0 : i32, i32
  }
  func.func @transform_4(%arg0: i32) -> (i32, i32) {
    %c0_i32 = arith.constant 0 : i32
    %c0_i32_0 = arith.constant 0 : i32
    %c0_i32_1 = arith.constant 0 : i32
    return %c0_i32, %c0_i32_0 : i32, i32
  }
  func.func @transform_5(%arg0: i32) -> (i32, i32) {
    %c0_i32 = arith.constant 0 : i32
    %c0_i32_0 = arith.constant 0 : i32
    %c0_i32_1 = arith.constant 0 : i32
    return %c0_i32, %c0_i32_0 : i32, i32
  }
  func.func @transform_6(%arg0: i32) -> (i32, i32) {
    %c0_i32 = arith.constant 0 : i32
    %c0_i32_0 = arith.constant 0 : i32
    %c0_i32_1 = arith.constant 0 : i32
    return %c0_i32, %c0_i32_0 : i32, i32
  }
  func.func @transform_7(%arg0: i32) -> (i32, i32) {
    %c0_i32 = arith.constant 0 : i32
    %c0_i32_0 = arith.constant 0 : i32
    %c0_i32_1 = arith.constant 0 : i32
    return %c0_i32, %c0_i32_0 : i32, i32
  }
  func.func @transform_8(%arg0: i32) -> (i32, i32) {
    %c0_i32 = arith.constant 0 : i32
    %c0_i32_0 = arith.constant 0 : i32
    %c0_i32_1 = arith.constant 0 : i32
    return %c0_i32, %c0_i32_0 : i32, i32
  }
  func.func @transform_9(%arg0: i32) -> (i32, i32) {
    %c0_i32 = arith.constant 0 : i32
    %c0_i32_0 = arith.constant 0 : i32
    %c0_i32_1 = arith.constant 0 : i32
    return %c0_i32, %c0_i32_0 : i32, i32
  }
  func.func @transform_10(%arg0: i32) -> (i32, i32) {
    %c0_i32 = arith.constant 0 : i32
    %c0_i32_0 = arith.constant 0 : i32
    return %arg0, %c0_i32 : i32, i32
  }
}

</mosaic_0001>

<llo_original>
// kernel: tpu_custom_call.1
$region0: #{tpu_custom_call.1}
  #allocation0 [shape = 'u32[]', space=smem, size = 0x4, offset = 0x4, fixed_abs, tag = 'smem constant byte address 0x4 - core index']
  #allocation1 [shape = 'u32[144,128]{1,0:T(1,128)}', space=vmem, size = 0x12000, scoped, tag = 'internal scratch']
  #allocation2 [shape = 'f32[1,1]{1,0:T(1,128)S(1)}', space=vmem, size = 0x200, scoped, tag = 'scoped memory for tpu_custom_call.1']
  %s0 = inlined_call_operand.vmem [shape: f32[8,2], index: 0, kind: input, shape index: {}]
  %s1 = inlined_call_operand.hbm [shape: f32[8,128], index: 1, kind: input, shape index: {}, may-alias: {1,10}]
  %s2 = inlined_call_operand.hbm [shape: f32[1,128], index: 2, kind: input, shape index: {}]
  %s3 = inlined_call_operand.vmem [shape: f32[32,128], index: 3, kind: input, shape index: {}]
  %s4 = inlined_call_operand.hbm [shape: f32[1,128], index: 4, kind: input, shape index: {}]
  %s5 = inlined_call_operand.hbm [shape: f32[64,128], index: 5, kind: input, shape index: {}]
  %s6 = inlined_call_operand.hbm [shape: f32[1,128], index: 6, kind: input, shape index: {}]
  %s7 = inlined_call_operand.hbm [shape: f32[1,32], index: 7, kind: input, shape index: {}]
  %s8 = inlined_call_operand.<no memory space> [shape: f32[1,1], index: 8, kind: input, shape index: {}]
  %s9 = inlined_call_operand.hbm [shape: f32[2,64], index: 9, kind: input, shape index: {}]
  %s10 = inlined_call_operand.hbm [shape: f32[8,128], index: 10, kind: output, shape index: {}, may-alias: {1,10}]
  %s11 = sld [smem:[#allocation0]]
  $region78: #{tpu_custom_call.1} parent=0
    _
  %s13 = ssub.s32 1, %s11
  %s14 = scalar_select 0, %s13, %s11
  %v15 = vstv %s8
  %16 = vst [vmem:[#allocation2] sm:$0x1] %v15
  $region1: #{tpu_custom_call.1} parent=0
    #allocation3 [shape = 'u8[4096]{0}', space=vmem, size = 0x1000, scoped, tag = 'input window, operand 1, single buffered']
    #allocation4 [shape = 's32[1]{0}', space=sflag, size = 0x4, scoped, tag = 'scoped memory for tpu_custom_call.1']
    #allocation5 [shape = 's32[1]{0}', space=sflag, size = 0x4, scoped, tag = 'scoped memory for tpu_custom_call.1']
    #allocation6 [shape = 'u8[512]{0}', space=vmem, size = 0x400, scoped, tag = 'input window, operand 2, single buffered']
    #allocation7 [shape = 's32[1]{0}', space=sflag, size = 0x4, scoped, tag = 'scoped memory for tpu_custom_call.1']
    #allocation8 [shape = 'u8[512]{0}', space=vmem, size = 0x400, scoped, tag = 'input window, operand 4, single buffered']
    #allocation9 [shape = 'u8[32768]{0}', space=vmem, size = 0x8000, scoped, tag = 'input window, operand 5, single buffered']
    #allocation10 [shape = 's32[1]{0}', space=sflag, size = 0x4, scoped, tag = 'scoped memory for tpu_custom_call.1']
    #allocation11 [shape = 'u8[512]{0}', space=vmem, size = 0x400, scoped, tag = 'input window, operand 6, single buffered']
    #allocation12 [shape = 'u8[512]{0}', space=vmem, size = 0x400, scoped, tag = 'input window, operand 7, single buffered']
    #allocation13 [shape = 's32[1]{0}', space=sflag, size = 0x4, scoped, tag = 'scoped memory for tpu_custom_call.1']
    #allocation14 [shape = 'u8[1024]{0}', space=vmem, size = 0x400, scoped, tag = 'input window, operand 9, single buffered']
    #allocation15 [shape = 'u8[4096]{0}', space=vmem, size = 0x1000, scoped, tag = 'output window, operand 0, single buffered']
    %17 = vsyncpa [#allocation4], 0
    %18 = vsyncpa [#allocation7], 0
    %19 = vsyncpa [#allocation10], 0
    %20 = vsyncpa [#allocation13], 0
    %21 = vsyncpa [#allocation5], 0
    // Predicated region
    $region2: #{tpu_custom_call.1} parent=1 // pred_check
      _
    $region3: #{tpu_custom_call.1} parent=1 // pred_check_branch
      %23 = sbr.rel (0) target = $region5
    $region4: #{tpu_custom_call.1} parent=1 // pred_region
      _
    $region5: #{tpu_custom_call.1} parent=1 // pred_fallthru
      _
    // Predicated region
    $region6: #{tpu_custom_call.1} parent=1 // pred_check
      _
    $region7: #{tpu_custom_call.1} parent=1 // pred_check_branch
      %25 = sbr.rel (0) target = $region9
    $region8: #{tpu_custom_call.1} parent=1 // pred_region
      %s27 = ssub.s32 128, 128
      %28 = vsyncadd [#allocation4], %s27
      %s30 = sshll.u32 [#allocation3], 4
      %s31 = int_to_ptr.vmem [resolvable:$true] %s30
      %33 = dma.hbm_to_vmem [thread:$0]  %s1, 128, %s31, [#allocation4]
    $region9: #{tpu_custom_call.1} parent=1 // pred_fallthru
      _
    // Predicated region
    $region10: #{tpu_custom_call.1} parent=1 // pred_check
      _
    $region11: #{tpu_custom_call.1} parent=1 // pred_check_branch
      %35 = sbr.rel (0) target = $region13
    $region12: #{tpu_custom_call.1} parent=1 // pred_region
      %s37 = ssub.s32 16, 16
      %38 = vsyncadd [#allocation7], %s37
      %s40 = sshll.u32 [#allocation6], 4
      %s41 = int_to_ptr.vmem [resolvable:$true] %s40
      %43 = dma.hbm_to_vmem [thread:$0]  %s2, 16, %s41, [#allocation7]
    $region13: #{tpu_custom_call.1} parent=1 // pred_fallthru
      _
    // Predicated region
    $region14: #{tpu_custom_call.1} parent=1 // pred_check
      _
    $region15: #{tpu_custom_call.1} parent=1 // pred_check_branch
      %45 = sbr.rel (0) target = $region17
    $region16: #{tpu_custom_call.1} parent=1 // pred_region
      _
    $region17: #{tpu_custom_call.1} parent=1 // pred_fallthru
      _
    // Predicated region
    $region18: #{tpu_custom_call.1} parent=1 // pred_check
      _
    $region19: #{tpu_custom_call.1} parent=1 // pred_check_branch
      %47 = sbr.rel (0) target = $region21
    $region20: #{tpu_custom_call.1} parent=1 // pred_region
      %s49 = ssub.s32 16, 16
      %50 = vsyncadd [#allocation7], %s49
      %s52 = sshll.u32 [#allocation8], 4
      %s53 = int_to_ptr.vmem [resolvable:$true] %s52
      %55 = dma.hbm_to_vmem [thread:$0]  %s4, 16, %s53, [#allocation7]
    $region21: #{tpu_custom_call.1} parent=1 // pred_fallthru
      _
    // Predicated region
    $region22: #{tpu_custom_call.1} parent=1 // pred_check
      _
    $region23: #{tpu_custom_call.1} parent=1 // pred_check_branch
      %57 = sbr.rel (0) target = $region25
    $region24: #{tpu_custom_call.1} parent=1 // pred_region
      %s59 = ssub.s32 1024, 1024
      %60 = vsyncadd [#allocation10], %s59
      %s61 = sshll.u32 [#allocation9], 4
      %s62 = int_to_ptr.vmem [resolvable:$true] %s61
      %67 = dma.hbm_to_vmem [thread:$0]  %s5, 1024, %s62, [#allocation10], 128, 128, 8
    $region25: #{tpu_custom_call.1} parent=1 // pred_fallthru
      _
    // Predicated region
    $region26: #{tpu_custom_call.1} parent=1 // pred_check
      _
    $region27: #{tpu_custom_call.1} parent=1 // pred_check_branch
      %69 = sbr.rel (0) target = $region29
    $region28: #{tpu_custom_call.1} parent=1 // pred_region
      %s71 = ssub.s32 16, 16
      %72 = vsyncadd [#allocation10], %s71
      %s74 = sshll.u32 [#allocation11], 4
      %s75 = int_to_ptr.vmem [resolvable:$true] %s74
      %77 = dma.hbm_to_vmem [thread:$0]  %s6, 16, %s75, [#allocation10]
    $region29: #{tpu_custom_call.1} parent=1 // pred_fallthru
      _
    // Predicated region
    $region30: #{tpu_custom_call.1} parent=1 // pred_check
      _
    $region31: #{tpu_custom_call.1} parent=1 // pred_check_branch
      %79 = sbr.rel (0) target = $region33
    $region32: #{tpu_custom_call.1} parent=1 // pred_region
      %s81 = ssub.s32 16, 16
      %82 = vsyncadd [#allocation13], %s81
      %s84 = sshll.u32 [#allocation12], 4
      %s85 = int_to_ptr.vmem [resolvable:$true] %s84
      %87 = dma.hbm_to_vmem [thread:$0]  %s7, 16, %s85, [#allocation13]
    $region33: #{tpu_custom_call.1} parent=1 // pred_fallthru
      _
    // Predicated region
    $region34: #{tpu_custom_call.1} parent=1 // pred_check
      _
    $region35: #{tpu_custom_call.1} parent=1 // pred_check_branch
      %89 = sbr.rel (0) target = $region37
    $region36: #{tpu_custom_call.1} parent=1 // pred_region
      _
    $region37: #{tpu_custom_call.1} parent=1 // pred_fallthru
      _
    // Predicated region
    $region38: #{tpu_custom_call.1} parent=1 // pred_check
      _
    $region39: #{tpu_custom_call.1} parent=1 // pred_check_branch
      %91 = sbr.rel (0) target = $region41
    $region40: #{tpu_custom_call.1} parent=1 // pred_region
      %s93 = ssub.s32 32, 32
      %94 = vsyncadd [#allocation13], %s93
      %s96 = sshll.u32 [#allocation14], 4
      %s97 = int_to_ptr.vmem [resolvable:$true] %s96
      %99 = dma.hbm_to_vmem [thread:$0]  %s9, 32, %s97, [#allocation13]
    $region41: #{tpu_custom_call.1} parent=1 // pred_fallthru
      _
    // Predicated region
    $region42: #{tpu_custom_call.1} parent=1 // pred_check
      _
    $region43: #{tpu_custom_call.1} parent=1 // pred_check_branch
      %101 = sbr.rel (0) target = $region45
    $region44: #{tpu_custom_call.1} parent=1 // pred_region
      %102 = dma.done [#allocation4], 128
    $region45: #{tpu_custom_call.1} parent=1 // pred_fallthru
      _
    // Predicated region
    $region46: #{tpu_custom_call.1} parent=1 // pred_check
      _
    $region47: #{tpu_custom_call.1} parent=1 // pred_check_branch
      %104 = sbr.rel (0) target = $region49
    $region48: #{tpu_custom_call.1} parent=1 // pred_region
      %105 = dma.done [#allocation7], 16
    $region49: #{tpu_custom_call.1} parent=1 // pred_fallthru
      _
    // Predicated region
    $region50: #{tpu_custom_call.1} parent=1 // pred_check
      _
    $region51: #{tpu_custom_call.1} parent=1 // pred_check_branch
      %107 = sbr.rel (0) target = $region53
    $region52: #{tpu_custom_call.1} parent=1 // pred_region
      %108 = dma.done [#allocation7], 16
    $region53: #{tpu_custom_call.1} parent=1 // pred_fallthru
      _
    // Predicated region
    $region54: #{tpu_custom_call.1} parent=1 // pred_check
      _
    $region55: #{tpu_custom_call.1} parent=1 // pred_check_branch
      %110 = sbr.rel (0) target = $region57
    $region56: #{tpu_custom_call.1} parent=1 // pred_region
      %111 = dma.done [#allocation10], 1024
    $region57: #{tpu_custom_call.1} parent=1 // pred_fallthru
      _
    // Predicated region
    $region58: #{tpu_custom_call.1} parent=1 // pred_check
      _
    $region59: #{tpu_custom_call.1} parent=1 // pred_check_branch
      %113 = sbr.rel (0) target = $region61
    $region60: #{tpu_custom_call.1} parent=1 // pred_region
      %114 = dma.done [#allocation10], 16
    $region61: #{tpu_custom_call.1} parent=1 // pred_fallthru
      _
    // Predicated region
    $region62: #{tpu_custom_call.1} parent=1 // pred_check
      _
    $region63: #{tpu_custom_call.1} parent=1 // pred_check_branch
      %116 = sbr.rel (0) target = $region65
    $region64: #{tpu_custom_call.1} parent=1 // pred_region
      %117 = dma.done [#allocation13], 16
    $region65: #{tpu_custom_call.1} parent=1 // pred_fallthru
      _
    // Predicated region
    $region66: #{tpu_custom_call.1} parent=1 // pred_check
      _
    $region67: #{tpu_custom_call.1} parent=1 // pred_check_branch
      %119 = sbr.rel (0) target = $region69
    $region68: #{tpu_custom_call.1} parent=1 // pred_region
      %120 = dma.done [#allocation13], 32
    $region69: #{tpu_custom_call.1} parent=1 // pred_fallthru
      _
    %v121 = vld [vmem:[%s0] sm:$0xff]
    %v122 = vld [vmem:[#allocation3] sm:$0xff]
    %v123 = vlaneseq
    %v124 = vand.u32 %v123, 127
    %vm125 = vcmp.ge.s32.totalorder %v124, 64
    %vm126 = vcmp.lt.s32.totalorder %v124, 96
    %vm127 = vmand %vm125, %vm126
    %v128 = vsel %vm127, 1.0, 0.5
    %v129 = vsel %vm127, 0.0, 0.5
    %v130 = vld [vmem:[#allocation6] sm:$0x1]
    %132 = vset.pattern.permute.xlu0 0
    %133 = vperm.xlu0 %132, %v121
    %v134 = vpop.permute.xlu0 %133
    %v137 = vlaneseq
    %v138 = vshrl.u32 %v137, 7
    %v139 = vsub.s32 0, %v138
    %v140 = vrot.slane %v130, %v139
    %v142 = vmul.f32 %v134, %v140
    %v143 = vld [vmem:[%s3] sm:$0xff]
    %v144 = vld [vmem:[%s3 + $0x8] sm:$0xff]
    %v145 = vld [vmem:[%s3 + $0x10] sm:$0xff]
    %v146 = vld [vmem:[%s3 + $0x18] sm:$0xff]
    %vm147 = vcmask 261120
    %v149 = vsel %vm147, %v122, 0
    %151 = vmatprep.subr.mxu0 0.0
    %152 = vmatpush1.msra.mxu0 0.0
    %153 = vmatprep.subr.mxu0 0.0
    %154 = vmatpush1.msra.mxu0 0.0
    %155 = vmatprep.subr.mxu0 0.0
    %156 = vmatpush1.msra.mxu0 0.0
    %157 = vmatprep.subr.mxu0 0.0
    %158 = vmatpush1.msra.mxu0 0.0
    %159 = vmatprep.subr.mxu0 0.0
    %160 = vmatpush1.msra.mxu0 0.0
    %161 = vmatprep.subr.mxu0 0.0
    %162 = vmatpush1.msra.mxu0 0.0
    %163 = vmatprep.subr.mxu0 0.0
    %164 = vmatpush1.msra.mxu0 0.0
    %165 = vmatprep.subr.mxu0 0.0
    %166 = vmatpush1.msra.mxu0 0.0
    %167 = vmatprep.subr.mxu0 0.0
    %168 = vmatpush1.msra.mxu0 0.0
    %169 = vmatprep.subr.mxu0 0.0
    %170 = vmatpush1.msra.mxu0 0.0
    %171 = vmatprep.subr.mxu0 0.0
    %172 = vmatpush1.msra.mxu0 0.0
    %173 = vmatprep.subr.mxu0 0.0
    %174 = vmatpush1.msra.mxu0 0.0
    %175 = vmatprep.subr.mxu0 0.0
    %176 = vmatpush1.msra.mxu0 %v146
    %177 = vmatprep.subr.mxu0 0.0
    %178 = vmatpush1.msra.mxu0 %v145
    %179 = vmatprep.subr.mxu0 0.0
    %180 = vmatpush1.msra.mxu0 %v144
    %181 = vmatprep.subr.mxu0 0.0
    %182 = vmatpush1.msra.mxu0 %v143
    %183 = vmatprep.subr.mxu0 0.0
    %184 = vmatpush2.msra.mxu0 0.0
    %185 = vmatprep.subr.mxu0 0.0
    %186 = vmatpush2.msra.mxu0 0.0
    %187 = vmatprep.subr.mxu0 0.0
    %188 = vmatpush2.msra.mxu0 0.0
    %189 = vmatprep.subr.mxu0 0.0
    %190 = vmatpush2.msra.mxu0 0.0
    %191 = vmatprep.subr.mxu0 0.0
    %192 = vmatpush2.msra.mxu0 0.0
    %193 = vmatprep.subr.mxu0 0.0
    %194 = vmatpush2.msra.mxu0 0.0
    %195 = vmatprep.subr.mxu0 0.0
    %196 = vmatpush2.msra.mxu0 0.0
    %197 = vmatprep.subr.mxu0 0.0
    %198 = vmatpush2.msra.mxu0 0.0
    %199 = vmatprep.subr.mxu0 0.0
    %200 = vmatpush2.msra.mxu0 0.0
    %201 = vmatprep.subr.mxu0 0.0
    %202 = vmatpush2.msra.mxu0 0.0
    %203 = vmatprep.subr.mxu0 0.0
    %204 = vmatpush2.msra.mxu0 0.0
    %205 = vmatprep.subr.mxu0 0.0
    %206 = vmatpush2.msra.mxu0 0.0
    %207 = vmatprep.subr.mxu0 0.0
    %208 = vmatpush2.msra.mxu0 0.0
    %209 = vmatprep.subr.mxu0 0.0
    %210 = vmatpush2.msra.mxu0 0.0
    %211 = vmatprep.subr.mxu0 0.0
    %212 = vmatpush2.msra.mxu0 0.0
    %213 = vmatprep.subr.mxu0 0.0
    %214 = vmatpush2.msra.mxu0 0.0
    %215 = vmatprep.mubr.f32.mxu0 0.0
    %216 = vmatmul.mubr.f32.gmra.mxu0 %v149
    %v217 = vpop.f32.mrf.mxu0
    %v218 = vadd.f32 0.0, %v217
    %v219 = vpop.f32.mrf.mxu0
    %220 = vdwg.mxu0
    %v221 = vadd.f32 %v142, %v218
    %v222 = vld [vmem:[#allocation8] sm:$0x1]
    %v224 = vlaneseq
    %v225 = vshrl.u32 %v224, 7
    %v226 = vsub.s32 0, %v225
    %v227 = vrot.slane %v222, %v226
    %v229 = vadd.f32 %v221, %v227
    %v230 = vmul.f32 %v229, %v128
    %v231 = vtanh.pop %v230
    %v232 = vmul.f32 %v231, %v128
    %v233 = vadd.f32 %v232, %v129
    %234 = vrot.lane.b32.xlu0 %v122, 96
    %v235 = vpop.permute.xlu0 %234
    %v237 = vmul.f32 %v233, %v235
    %239 = vrot.lane.b32.xlu0 %v233, 64
    %v240 = vpop.permute.xlu0 %239
    %v242 = vmul.f32 %v233, %v240
    %244 = vrot.lane.b32.xlu0 %v242, 32
    %v245 = vpop.permute.xlu0 %244
    %v247 = vadd.f32 %v237, %v245
    %v248 = vtanh.pop %v247
    %250 = vrot.lane.b32.xlu0 %v248, 64
    %v251 = vpop.permute.xlu0 %250
    %v253 = vmul.f32 %v233, %v251
    %255 = vrot.lane.b32.xlu0 %v253, 32
    %v256 = vpop.permute.xlu0 %255
    %v258 = vsel %vm147, %v256, %v122
    %v259 = vld [vmem:[#allocation9] sm:$0xff]
    %v260 = vld [vmem:[#allocation9 + $0x8] sm:$0xff]
    %v261 = vld [vmem:[#allocation9 + $0x10] sm:$0xff]
    %v262 = vld [vmem:[#allocation9 + $0x18] sm:$0xff]
    %v263 = vld [vmem:[#allocation9 + $0x20] sm:$0xff]
    %v264 = vld [vmem:[#allocation9 + $0x28] sm:$0xff]
    %v265 = vld [vmem:[#allocation9 + $0x30] sm:$0xff]
    %v266 = vld [vmem:[#allocation9 + $0x38] sm:$0xff]
    %v267 = vld [vmem:[#allocation11] sm:$0x1]
    %v269 = vlaneseq
    %v270 = vshrl.u32 %v269, 7
    %v271 = vsub.s32 0, %v270
    %v272 = vrot.slane %v267, %v271
    %vm274 = vcmask 523264
    %v276 = vsel %vm274, %v258, 0
    %278 = vmatprep.subr.mxu0 0.0
    %279 = vmatpush1.msra.mxu0 0.0
    %280 = vmatprep.subr.mxu0 0.0
    %281 = vmatpush1.msra.mxu0 0.0
    %282 = vmatprep.subr.mxu0 0.0
    %283 = vmatpush1.msra.mxu0 0.0
    %284 = vmatprep.subr.mxu0 0.0
    %285 = vmatpush1.msra.mxu0 0.0
    %286 = vmatprep.subr.mxu0 0.0
    %287 = vmatpush1.msra.mxu0 0.0
    %288 = vmatprep.subr.mxu0 0.0
    %289 = vmatpush1.msra.mxu0 0.0
    %290 = vmatprep.subr.mxu0 0.0
    %291 = vmatpush1.msra.mxu0 0.0
    %292 = vmatprep.subr.mxu0 0.0
    %293 = vmatpush1.msra.mxu0 0.0
    %294 = vmatprep.subr.mxu0 0.0
    %295 = vmatpush1.msra.mxu0 %v266
    %296 = vmatprep.subr.mxu0 0.0
    %297 = vmatpush1.msra.mxu0 %v265
    %298 = vmatprep.subr.mxu0 0.0
    %299 = vmatpush1.msra.mxu0 %v264
    %300 = vmatprep.subr.mxu0 0.0
    %301 = vmatpush1.msra.mxu0 %v263
    %302 = vmatprep.subr.mxu0 0.0
    %303 = vmatpush1.msra.mxu0 %v262
    %304 = vmatprep.subr.mxu0 0.0
    %305 = vmatpush1.msra.mxu0 %v261
    %306 = vmatprep.subr.mxu0 0.0
    %307 = vmatpush1.msra.mxu0 %v260
    %308 = vmatprep.subr.mxu0 0.0
    %309 = vmatpush1.msra.mxu0 %v259
    %310 = vmatprep.subr.mxu0 0.0
    %311 = vmatpush2.msra.mxu0 0.0
    %312 = vmatprep.subr.mxu0 0.0
    %313 = vmatpush2.msra.mxu0 0.0
    %314 = vmatprep.subr.mxu0 0.0
    %315 = vmatpush2.msra.mxu0 0.0
    %316 = vmatprep.subr.mxu0 0.0
    %317 = vmatpush2.msra.mxu0 0.0
    %318 = vmatprep.subr.mxu0 0.0
    %319 = vmatpush2.msra.mxu0 0.0
    %320 = vmatprep.subr.mxu0 0.0
    %321 = vmatpush2.msra.mxu0 0.0
    %322 = vmatprep.subr.mxu0 0.0
    %323 = vmatpush2.msra.mxu0 0.0
    %324 = vmatprep.subr.mxu0 0.0
    %325 = vmatpush2.msra.mxu0 0.0
    %326 = vmatprep.subr.mxu0 0.0
    %327 = vmatpush2.msra.mxu0 0.0
    %328 = vmatprep.subr.mxu0 0.0
    %329 = vmatpush2.msra.mxu0 0.0
    %330 = vmatprep.subr.mxu0 0.0
    %331 = vmatpush2.msra.mxu0 0.0
    %332 = vmatprep.subr.mxu0 0.0
    %333 = vmatpush2.msra.mxu0 0.0
    %334 = vmatprep.subr.mxu0 0.0
    %335 = vmatpush2.msra.mxu0 0.0
    %336 = vmatprep.subr.mxu0 0.0
    %337 = vmatpush2.msra.mxu0 0.0
    %338 = vmatprep.subr.mxu0 0.0
    %339 = vmatpush2.msra.mxu0 0.0
    %340 = vmatprep.subr.mxu0 0.0
    %341 = vmatpush2.msra.mxu0 0.0
    %342 = vmatprep.mubr.f32.mxu0 0.0
    %343 = vmatmul.mubr.f32.gmra.mxu0 %v276
    %v344 = vpop.f32.mrf.mxu0
    %v345 = vadd.f32 %v272, %v344
    %v346 = vpop.f32.mrf.mxu0
    %347 = vdwg.mxu0
    %v348 = vmul.f32 %v345, %v128
    %v349 = vtanh.pop %v348
    %v350 = vmul.f32 %v349, %v128
    %v351 = vadd.f32 %v350, %v129
    %352 = vrot.lane.b32.xlu0 %v122, 64
    %v353 = vpop.permute.xlu0 %352
    %v355 = vmul.f32 %v351, %v353
    %357 = vrot.lane.b32.xlu0 %v351, 64
    %v358 = vpop.permute.xlu0 %357
    %v360 = vmul.f32 %v351, %v358
    %362 = vrot.lane.b32.xlu0 %v360, 32
    %v363 = vpop.permute.xlu0 %362
    %v365 = vadd.f32 %v355, %v363
    %v366 = vtanh.pop %v365
    %368 = vrot.lane.b32.xlu0 %v366, 64
    %v369 = vpop.permute.xlu0 %368
    %v371 = vmul.f32 %v351, %v369
    %v372 = vld [vmem:[#allocation14] sm:$0x1]
    %v373 = vld [vmem:[#allocation14 + $0x1] sm:$0x1]
    %v374 = vsub.f32 %v373, %v372
    %375 = vset.pattern.permute.xlu0 1
    %376 = vperm.xlu0 %375, %v121
    %v377 = vpop.permute.xlu0 %376
    %v379 = vlaneseq
    %v380 = vshrl.u32 %v379, 7
    %v381 = vsub.s32 0, %v380
    %v382 = vrot.slane %v374, %v381
    %v383 = vmul.f32 %v377, %v382
    %v384 = vlaneseq
    %v385 = vshrl.u32 %v384, 7
    %v386 = vsub.s32 0, %v385
    %v387 = vrot.slane %v372, %v386
    %v388 = vadd.f32 %v387, %v383
    %v389 = vadd.f32 %v388, 1.0
    %391 = vrot.lane.b32.xlu0 %v389, 96
    %v392 = vpop.permute.xlu0 %391
    %v394 = vmul.f32 %v371, %v392
    %396 = vrot.lane.b32.xlu0 %v388, 64
    %v397 = vpop.permute.xlu0 %396
    %v399 = vadd.f32 %v394, %v397
    %v400 = vld [vmem:[#allocation12] sm:$0x1]
    %v402 = vlaneseq
    %v403 = vshrl.u32 %v402, 7
    %v404 = vsub.s32 0, %v403
    %v405 = vrot.slane %v400, %v404
    %406 = vrot.lane.b32.xlu0 %v405, 96
    %v407 = vpop.permute.xlu0 %406
    %v409 = vmul.f32 %v399, %v407
    %411 = vrot.lane.b32.xlu0 %v409, 32
    %v412 = vpop.permute.xlu0 %411
    %v414 = vsel %vm147, %v412, 0.0
    %415 = vadd.xlane.f32.xlu0 %v414
    %v416 = vpop.xlane.xlu0 %415
    %v417 = vld [vmem:[#allocation2] sm:$0x1]
    %v419 = vlaneseq
    %v420 = vshrl.u32 %v419, 7
    %v421 = vsub.s32 0, %v420
    %v422 = vrot.slane %v417, %v421
    %v424 = vadd.f32 %v416, %v422
    %vm425 = vcmp.eq.s32.totalorder %v124, 20
    %427 = vset.pattern.permute.xlu0 0
    %428 = vperm.xlu0 %427, %v424
    %v429 = vpop.permute.xlu0 %428
    %v431 = vsel %vm425, %v429, %v256
    %433 = vrot.lane.b32.xlu0 %v399, 64
    %v434 = vpop.permute.xlu0 %433
    %437 = vrot.lane.b32.xlu0 %v247, 32
    %v438 = vpop.permute.xlu0 %437
    %441 = vrot.lane.b32.xlu0 %v365, 64
    %v442 = vpop.permute.xlu0 %441
    %v444 = vsel %vm147, %v431, %v434
    %v445 = vsel %vm274, %v444, %v438
    %vm446 = vcmask 785408
    %v447 = vsel %vm446, %v445, %v442
    %448 = vst [vmem:[#allocation15] sm:$0xff] %v447
    // Predicated region
    $region70: #{tpu_custom_call.1} parent=1 // pred_check
      _
    $region71: #{tpu_custom_call.1} parent=1 // pred_check_branch
      %450 = sbr.rel (0) target = $region73
    $region72: #{tpu_custom_call.1} parent=1 // pred_region
      %s452 = ssub.s32 128, 128
      %453 = vsyncadd [#allocation5], %s452
      %s455 = sshll.u32 [#allocation15], 4
      %s456 = int_to_ptr.vmem [resolvable:$true] %s455
      %458 = dma.vmem_to_hbm [thread:$0]  %s456, 128, %s10, [#allocation5]
    $region73: #{tpu_custom_call.1} parent=1 // pred_fallthru
      _
    // Predicated region
    $region74: #{tpu_custom_call.1} parent=1 // pred_check
      _
    $region75: #{tpu_custom_call.1} parent=1 // pred_check_branch
      %460 = sbr.rel (0) target = $region77
    $region76: #{tpu_custom_call.1} parent=1 // pred_region
      %461 = dma.done [#allocation5], 128
    $region77: #{tpu_custom_call.1} parent=1 // pred_fallthru
      _
    %462 = vsyncpa [#allocation4], 1
    %463 = vsyncpa [#allocation7], 1
    %464 = vsyncpa [#allocation10], 1
    %465 = vsyncpa [#allocation13], 1
    %466 = vsyncpa [#allocation5], 1

</llo_original>
